<compile_context>
chip_gen: v7x
topology: tpu7x:2x2x1
jax: 0.10.0
libtpu: 0.0.40
codegen_flags: <defaults>
</compile_context>

<pallas_src>
import functools

import jax
import jax.numpy as jnp
from jax.experimental import pallas as pl
from jax.experimental.pallas import tpu as pltpu

LANE = 128  # TPU lane width


def _round_up(n: int, m: int) -> int:
    return ((n + m - 1) // m) * m


def dqn_kernel(x_ref, w1_ref, b1_ref, w2_ref, b2_ref, w3_ref, b3_ref, o_ref):
    # Feature-major: x_ref is (state, TILE_B); weights are (out, in); biases
    # are (out, 1) and broadcast along lanes.  All accumulation in f32.
    x = x_ref[...]                                                  # (S, TB)
    h1 = jnp.dot(w1_ref[...], x, preferred_element_type=jnp.float32) + b1_ref[...]
    h1 = jnp.maximum(h1, 0.0)                                       # (32, TB)
    h2 = jnp.dot(w2_ref[...], h1, preferred_element_type=jnp.float32) + b2_ref[...]
    h2 = jnp.maximum(h2, 0.0)                                       # (16, TB)
    q = jnp.dot(w3_ref[...], h2, preferred_element_type=jnp.float32) + b3_ref[...]
    o_ref[...] = q.astype(o_ref.dtype)                              # (A, TB)


def _pick_tile(batch: int, tile_b: int) -> int:
    """Lane-dim tile: full batch if small, else a multiple of 128, capped so
    the grid keeps >= 2 steps (both v7x TensorCores get work)."""
    if batch <= LANE:
        return batch
    cap = _round_up(pl.cdiv(batch, 2), LANE)
    tb = min(tile_b, cap)
    return max(LANE, (tb // LANE) * LANE)


@functools.partial(jax.jit, static_argnames=("tile_b", "out_dtype"))
def dqn_forward_feature_major(x_fm, params, *, tile_b=65536, out_dtype=jnp.float32):
    """x_fm: (state_size, B) f32 (batch in the lane dim).
    Returns (action_size, B) Q-values.  Zero extra HBM passes."""
    state_size, batch = x_fm.shape
    h1 = params["w1"].shape[1]
    h2 = params["w2"].shape[1]
    action_size = params["w3"].shape[1]
    # Guard against accidentally passing raw PyTorch (out, in) weights.
    assert params["w1"].shape == (state_size, h1), "w1 must be (in, out)"
    assert params["w2"].shape == (h1, h2), "w2 must be (in, out)"
    assert params["w3"].shape == (h2, action_size), "w3 must be (in, out)"

    # Tiny (<5 KiB total) feature-major views of the parameters; negligible.
    w1 = params["w1"].T                      # (32, state)
    w2 = params["w2"].T                      # (16, 32)
    w3 = params["w3"].T                      # (action, 16)
    b1 = params["b1"].reshape(h1, 1)
    b2 = params["b2"].reshape(h2, 1)
    b3 = params["b3"].reshape(action_size, 1)

    tb = _pick_tile(batch, tile_b)
    grid = (pl.cdiv(batch, tb),)             # partial trailing block is fine

    def resident(shape):
        # Same full-array block every grid step -> stays VMEM-resident.
        return pl.BlockSpec(shape, lambda i: (0, 0))

    out = pl.pallas_call(
        dqn_kernel,
        out_shape=jax.ShapeDtypeStruct((action_size, batch), out_dtype),
        grid=grid,
        in_specs=[
            pl.BlockSpec((state_size, tb), lambda i: (0, i)),   # streamed x
            resident(w1.shape), resident(b1.shape),
            resident(w2.shape), resident(b2.shape),
            resident(w3.shape), resident(b3.shape),
        ],
        out_specs=pl.BlockSpec((action_size, tb), lambda i: (0, i)),
        compiler_params=pltpu.CompilerParams(
            # Batch axis is embarrassingly parallel -> shard over v7x's 2 TCs.
            dimension_semantics=("parallel",),
            # Lane-dense tiles: ~22 MiB at TILE_B=64k incl. double buffers;
            # 48 MiB keeps headroom under v7x's 64 MiB physical VMEM.
            vmem_limit_bytes=48 * 1024 * 1024,
        ),
    )(x_fm, w1, b1, w2, b2, w3, b3)
    return out


@functools.partial(jax.jit, static_argnames=("tile_b", "out_dtype"))
def dqn_forward(x, params, *, tile_b=65536, out_dtype=jnp.float32):
    """PyTorch-compatible API: x (B, state_size) -> (B, action_size).
    NOTE: the boundary transposes cost one extra HBM pass over x and out each;
    callers that can produce feature-major data should use
    dqn_forward_feature_major directly."""
    out_fm = dqn_forward_feature_major(x.T, params, tile_b=tile_b, out_dtype=out_dtype)
    return out_fm.T


def init_dqn_params(key, state_size, action_size):
    """Mimics PyTorch nn.Linear default init U(-1/sqrt(fan_in), 1/sqrt(fan_in)).
    Weights stored as (in_features, out_features); biases as (1, out_features)."""
    def linear(k, fan_in, fan_out):
        kw, kb = jax.random.split(k)
        bound = 1.0 / jnp.sqrt(fan_in)
        w = jax.random.uniform(kw, (fan_in, fan_out), jnp.float32, -bound, bound)
        b = jax.random.uniform(kb, (1, fan_out), jnp.float32, -bound, bound)
        return w, b

    k1, k2, k3 = jax.random.split(key, 3)
    w1, b1 = linear(k1, state_size, 32)
    w2, b2 = linear(k2, 32, 16)
    w3, b3 = linear(k3, 16, action_size)
    return {"w1": w1, "b1": b1, "w2": w2, "b2": b2, "w3": w3, "b3": b3}


def dqn_reference(x, p):
    """Pure-JAX f32 reference matching the PyTorch forward (x: (B, state))."""
    h1 = jnp.maximum(x @ p["w1"] + p["b1"], 0.0)
    h2 = jnp.maximum(h1 @ p["w2"] + p["b2"], 0.0)
    return h2 @ p["w3"] + p["b3"]


if __name__ == "__main__":
    state_size = 8
    action_size = 4

    key = jax.random.PRNGKey(0)
    k_params, k_x1, k_x2 = jax.random.split(key, 3)
    params = init_dqn_params(k_params, state_size, action_size)

    # Tolerance covers MXU default-precision rounding differences between the
    # Mosaic matmuls and the XLA reference matmuls.
    tol = dict(atol=2e-2, rtol=2e-2)

    # 1) Small PyTorch-shaped batch through the compatibility wrapper.
    batch = 2
    x = jax.random.normal(k_x1, (batch, state_size), jnp.float32)
    out = jax.block_until_ready(dqn_forward(x, params))
    assert out.shape == (batch, action_size)
    ref = dqn_reference(x, params)
    assert jnp.allclose(out, ref, **tol), "mismatch vs f32 reference (small batch)"

    # 2) Feature-major entry with a multi-step grid and a partial trailing
    #    block (B=300, tile=128): no padding, no output slice.
    big_b = 300
    x_fm = jax.random.normal(k_x2, (state_size, big_b), jnp.float32)
    out_fm = jax.block_until_ready(
        dqn_forward_feature_major(x_fm, params, tile_b=128))
    assert out_fm.shape == (action_size, big_b)
    ref_fm = dqn_reference(x_fm.T, params).T
    assert jnp.allclose(out_fm, ref_fm, **tol), "mismatch vs f32 reference (big batch)"

    print("KERNEL_OK")
</pallas_src>

<mosaic_0001>
module attributes {stable_mosaic.version = 11 : i64} {
  func.func @dqn_kernel(%arg0: i32, %arg1: memref<8x2xf32, #tpu.memory_space<vmem>>, %arg2: memref<32x8xf32, #tpu.memory_space<vmem>>, %arg3: memref<32x1xf32, #tpu.memory_space<vmem>>, %arg4: memref<16x32xf32, #tpu.memory_space<vmem>>, %arg5: memref<16x1xf32, #tpu.memory_space<vmem>>, %arg6: memref<4x16xf32, #tpu.memory_space<vmem>>, %arg7: memref<4x1xf32, #tpu.memory_space<vmem>>, %arg8: memref<4x2xf32, #tpu.memory_space<vmem>>) attributes {dimension_semantics = [#tpu.dimension_semantics<parallel>], iteration_bounds = array<i64: 1>, scalar_prefetch = 0 : i64, scratch_operands = 0 : i64, tpu.core_type = #tpu.core_type<tc>, window_params = [{transform_indices = @transform_0, window_bounds = array<i64: 8, 2>}, {pipeline_mode = #tpu.pipeline_mode<synchronous>, transform_indices = @transform_1, window_bounds = array<i64: 32, 8>}, {pipeline_mode = #tpu.pipeline_mode<synchronous>, transform_indices = @transform_2, window_bounds = array<i64: 32, 1>}, {pipeline_mode = #tpu.pipeline_mode<synchronous>, transform_indices = @transform_3, window_bounds = array<i64: 16, 32>}, {pipeline_mode = #tpu.pipeline_mode<synchronous>, transform_indices = @transform_4, window_bounds = array<i64: 16, 1>}, {pipeline_mode = #tpu.pipeline_mode<synchronous>, transform_indices = @transform_5, window_bounds = array<i64: 4, 16>}, {pipeline_mode = #tpu.pipeline_mode<synchronous>, transform_indices = @transform_6, window_bounds = array<i64: 4, 1>}, {transform_indices = @transform_7, window_bounds = array<i64: 4, 2>}]} {
    %c0 = arith.constant 0 : index
    %c0_0 = arith.constant 0 : index
    %0 = vector.load %arg1[%c0, %c0_0] : memref<8x2xf32, #tpu.memory_space<vmem>>, vector<8x2xf32>
    %c0_1 = arith.constant 0 : index
    %c0_2 = arith.constant 0 : index
    %1 = vector.load %arg2[%c0_1, %c0_2] : memref<32x8xf32, #tpu.memory_space<vmem>>, vector<32x8xf32>
    %cst = arith.constant dense<0.000000e+00> : vector<32x2xf32>
    %2 = tpu.matmul %1, %0, %cst {dimension_numbers = #tpu.dot_dimension_numbers<[1], [0], [0], [1], [0, 0, 1, 1], [], []>} : vector<32x8xf32>, vector<8x2xf32>, vector<32x2xf32> -> vector<32x2xf32>
    %c0_3 = arith.constant 0 : index
    %c0_4 = arith.constant 0 : index
    %3 = vector.load %arg3[%c0_3, %c0_4] : memref<32x1xf32, #tpu.memory_space<vmem>>, vector<32x1xf32>
    %4 = vector.broadcast %3 : vector<32x1xf32> to vector<32x2xf32>
    %5 = arith.addf %2, %4 : vector<32x2xf32>
    %cst_5 = arith.constant 0.000000e+00 : f32
    %6 = vector.broadcast %cst_5 : f32 to vector<32x2xf32>
    %7 = arith.maximumf %5, %6 : vector<32x2xf32>
    %c0_6 = arith.constant 0 : index
    %c0_7 = arith.constant 0 : index
    %8 = vector.load %arg4[%c0_6, %c0_7] : memref<16x32xf32, #tpu.memory_space<vmem>>, vector<16x32xf32>
    %cst_8 = arith.constant dense<0.000000e+00> : vector<16x2xf32>
    %9 = tpu.matmul %8, %7, %cst_8 {dimension_numbers = #tpu.dot_dimension_numbers<[1], [0], [0], [1], [0, 0, 1, 1], [], []>} : vector<16x32xf32>, vector<32x2xf32>, vector<16x2xf32> -> vector<16x2xf32>
    %c0_9 = arith.constant 0 : index
    %c0_10 = arith.constant 0 : index
    %10 = vector.load %arg5[%c0_9, %c0_10] : memref<16x1xf32, #tpu.memory_space<vmem>>, vector<16x1xf32>
    %11 = vector.broadcast %10 : vector<16x1xf32> to vector<16x2xf32>
    %12 = arith.addf %9, %11 : vector<16x2xf32>
    %cst_11 = arith.constant 0.000000e+00 : f32
    %13 = vector.broadcast %cst_11 : f32 to vector<16x2xf32>
    %14 = arith.maximumf %12, %13 : vector<16x2xf32>
    %c0_12 = arith.constant 0 : index
    %c0_13 = arith.constant 0 : index
    %15 = vector.load %arg6[%c0_12, %c0_13] : memref<4x16xf32, #tpu.memory_space<vmem>>, vector<4x16xf32>
    %cst_14 = arith.constant dense<0.000000e+00> : vector<4x2xf32>
    %16 = tpu.matmul %15, %14, %cst_14 {dimension_numbers = #tpu.dot_dimension_numbers<[1], [0], [0], [1], [0, 0, 1, 1], [], []>} : vector<4x16xf32>, vector<16x2xf32>, vector<4x2xf32> -> vector<4x2xf32>
    %c0_15 = arith.constant 0 : index
    %c0_16 = arith.constant 0 : index
    %17 = vector.load %arg7[%c0_15, %c0_16] : memref<4x1xf32, #tpu.memory_space<vmem>>, vector<4x1xf32>
    %18 = vector.broadcast %17 : vector<4x1xf32> to vector<4x2xf32>
    %19 = arith.addf %16, %18 : vector<4x2xf32>
    %c0_17 = arith.constant 0 : index
    %c0_18 = arith.constant 0 : index
    %20 = vector.load %arg8[%c0_17, %c0_18] : memref<4x2xf32, #tpu.memory_space<vmem>>, vector<4x2xf32>
    tpu.vector_store %arg8[%c0_17, %c0_18], %19 {strides = array<i32>} : memref<4x2xf32, #tpu.memory_space<vmem>>, vector<4x2xf32>,
    return
  }
  func.func @transform_0(%arg0: i32) -> (i32, i32) {
    %c0_i32 = arith.constant 0 : i32
    %c0_i32_0 = arith.constant 0 : i32
    return %c0_i32, %arg0 : i32, i32
  }
  func.func @transform_1(%arg0: i32) -> (i32, i32) {
    %c0_i32 = arith.constant 0 : i32
    %c0_i32_0 = arith.constant 0 : i32
    %c0_i32_1 = arith.constant 0 : i32
    return %c0_i32, %c0_i32_0 : i32, i32
  }
  func.func @transform_2(%arg0: i32) -> (i32, i32) {
    %c0_i32 = arith.constant 0 : i32
    %c0_i32_0 = arith.constant 0 : i32
    %c0_i32_1 = arith.constant 0 : i32
    return %c0_i32, %c0_i32_0 : i32, i32
  }
  func.func @transform_3(%arg0: i32) -> (i32, i32) {
    %c0_i32 = arith.constant 0 : i32
    %c0_i32_0 = arith.constant 0 : i32
    %c0_i32_1 = arith.constant 0 : i32
    return %c0_i32, %c0_i32_0 : i32, i32
  }
  func.func @transform_4(%arg0: i32) -> (i32, i32) {
    %c0_i32 = arith.constant 0 : i32
    %c0_i32_0 = arith.constant 0 : i32
    %c0_i32_1 = arith.constant 0 : i32
    return %c0_i32, %c0_i32_0 : i32, i32
  }
  func.func @transform_5(%arg0: i32) -> (i32, i32) {
    %c0_i32 = arith.constant 0 : i32
    %c0_i32_0 = arith.constant 0 : i32
    %c0_i32_1 = arith.constant 0 : i32
    return %c0_i32, %c0_i32_0 : i32, i32
  }
  func.func @transform_6(%arg0: i32) -> (i32, i32) {
    %c0_i32 = arith.constant 0 : i32
    %c0_i32_0 = arith.constant 0 : i32
    %c0_i32_1 = arith.constant 0 : i32
    return %c0_i32, %c0_i32_0 : i32, i32
  }
  func.func @transform_7(%arg0: i32) -> (i32, i32) {
    %c0_i32 = arith.constant 0 : i32
    %c0_i32_0 = arith.constant 0 : i32
    return %c0_i32, %arg0 : i32, i32
  }
}

</mosaic_0001>

<llo_original>
// kernel: dqn_forward_feature_major.1
$region0: #{dqn_forward_feature_major.1}
  #allocation0 [shape = 'u32[]', space=smem, size = 0x4, offset = 0x4, fixed_abs, tag = 'smem constant byte address 0x4 - core index']
  #allocation1 [shape = 'u32[144,128]{1,0:T(1,128)}', space=vmem, size = 0x12000, scoped, tag = 'internal scratch']
  %s0 = inlined_call_operand.vmem [shape: f32[8,2], index: 0, kind: input, shape index: {}]
  %s1 = inlined_call_operand.vmem [shape: f32[32,8], index: 1, kind: input, shape index: {}]
  %s2 = inlined_call_operand.vmem [shape: f32[32,1], index: 2, kind: input, shape index: {}]
  %s3 = inlined_call_operand.vmem [shape: f32[16,32], index: 3, kind: input, shape index: {}]
  %s4 = inlined_call_operand.vmem [shape: f32[16,1], index: 4, kind: input, shape index: {}]
  %s5 = inlined_call_operand.vmem [shape: f32[4,16], index: 5, kind: input, shape index: {}]
  %s6 = inlined_call_operand.vmem [shape: f32[4,1], index: 6, kind: input, shape index: {}]
  %s7 = inlined_call_operand.vmem [shape: f32[4,2], index: 7, kind: output, shape index: {}]
  %s8 = sld [smem:[#allocation0]]
  $region38: #{dqn_forward_feature_major.1} parent=0
    _
  %s10 = ssub.s32 1, %s8
  %s11 = scalar_select 0, %s10, %s8
  // Predicated region
  $region2: #{dqn_forward_feature_major.1} parent=0 // pred_check
    _
  $region3: #{dqn_forward_feature_major.1} parent=0 // pred_check_branch
    %13 = sbr.rel (0) target = $region5
  $region4: #{dqn_forward_feature_major.1} parent=0 // pred_region
    _
  $region5: #{dqn_forward_feature_major.1} parent=0 // pred_fallthru
    _
  // Predicated region
  $region6: #{dqn_forward_feature_major.1} parent=0 // pred_check
    _
  $region7: #{dqn_forward_feature_major.1} parent=0 // pred_check_branch
    %15 = sbr.rel (0) target = $region9
  $region8: #{dqn_forward_feature_major.1} parent=0 // pred_region
    _
  $region9: #{dqn_forward_feature_major.1} parent=0 // pred_fallthru
    _
  // Predicated region
  $region10: #{dqn_forward_feature_major.1} parent=0 // pred_check
    _
  $region11: #{dqn_forward_feature_major.1} parent=0 // pred_check_branch
    %17 = sbr.rel (0) target = $region13
  $region12: #{dqn_forward_feature_major.1} parent=0 // pred_region
    _
  $region13: #{dqn_forward_feature_major.1} parent=0 // pred_fallthru
    _
  // Predicated region
  $region14: #{dqn_forward_feature_major.1} parent=0 // pred_check
    _
  $region15: #{dqn_forward_feature_major.1} parent=0 // pred_check_branch
    %19 = sbr.rel (0) target = $region17
  $region16: #{dqn_forward_feature_major.1} parent=0 // pred_region
    _
  $region17: #{dqn_forward_feature_major.1} parent=0 // pred_fallthru
    _
  // Predicated region
  $region18: #{dqn_forward_feature_major.1} parent=0 // pred_check
    _
  $region19: #{dqn_forward_feature_major.1} parent=0 // pred_check_branch
    %21 = sbr.rel (0) target = $region21
  $region20: #{dqn_forward_feature_major.1} parent=0 // pred_region
    _
  $region21: #{dqn_forward_feature_major.1} parent=0 // pred_fallthru
    _
  // Predicated region
  $region22: #{dqn_forward_feature_major.1} parent=0 // pred_check
    _
  $region23: #{dqn_forward_feature_major.1} parent=0 // pred_check_branch
    %23 = sbr.rel (0) target = $region25
  $region24: #{dqn_forward_feature_major.1} parent=0 // pred_region
    _
  $region25: #{dqn_forward_feature_major.1} parent=0 // pred_fallthru
    _
  // Predicated region
  $region26: #{dqn_forward_feature_major.1} parent=0 // pred_check
    _
  $region27: #{dqn_forward_feature_major.1} parent=0 // pred_check_branch
    %25 = sbr.rel (0) target = $region29
  $region28: #{dqn_forward_feature_major.1} parent=0 // pred_region
    _
  $region29: #{dqn_forward_feature_major.1} parent=0 // pred_fallthru
    _
  %v26 = vld [vmem:[%s0] sm:$0xff]
  %v27 = vld [vmem:[%s1] sm:$0xff]
  %v28 = vld [vmem:[%s1 + $0x8] sm:$0xff]
  %v29 = vld [vmem:[%s1 + $0x10] sm:$0xff]
  %v30 = vld [vmem:[%s1 + $0x18] sm:$0xff]
  %v31 = vld [vmem:[%s2] sm:$0xff]
  %v32 = vld [vmem:[%s2 + $0x8] sm:$0xff]
  %v33 = vld [vmem:[%s2 + $0x10] sm:$0xff]
  %v34 = vld [vmem:[%s2 + $0x18] sm:$0xff]
  %36 = vset.pattern.permute.xlu0 0
  %37 = vperm.xlu0 %36, %v31
  %v38 = vpop.permute.xlu0 %37
  %41 = vset.pattern.permute.xlu0 0
  %42 = vperm.xlu0 %41, %v32
  %v43 = vpop.permute.xlu0 %42
  %46 = vset.pattern.permute.xlu0 0
  %47 = vperm.xlu0 %46, %v33
  %v48 = vpop.permute.xlu0 %47
  %51 = vset.pattern.permute.xlu0 0
  %52 = vperm.xlu0 %51, %v34
  %v53 = vpop.permute.xlu0 %52
  %vm55 = vcmask 64512
  %v57 = vsel %vm55, %v27, 0
  %v60 = vsel %vm55, %v28, 0
  %v63 = vsel %vm55, %v29, 0
  %v66 = vsel %vm55, %v30, 0
  %68 = vmatprep.subr.mxu0 0.0
  %69 = vmatpush1.msra.mxu0 %v26
  %70 = vmatprep.subr.mxu0 0.0
  %71 = vmatpush1.msra.mxu0 0.0
  %72 = vmatprep.subr.mxu0 0.0
  %73 = vmatpush1.msra.mxu0 0.0
  %74 = vmatprep.subr.mxu0 0.0
  %75 = vmatpush1.msra.mxu0 0.0
  %76 = vmatprep.subr.mxu0 0.0
  %77 = vmatpush1.msra.mxu0 0.0
  %78 = vmatprep.subr.mxu0 0.0
  %79 = vmatpush1.msra.mxu0 0.0
  %80 = vmatprep.subr.mxu0 0.0
  %81 = vmatpush1.msra.mxu0 0.0
  %82 = vmatprep.subr.mxu0 0.0
  %83 = vmatpush1.msra.mxu0 0.0
  %84 = vmatprep.subr.mxu0 0.0
  %85 = vmatpush1.msra.mxu0 0.0
  %86 = vmatprep.subr.mxu0 0.0
  %87 = vmatpush1.msra.mxu0 0.0
  %88 = vmatprep.subr.mxu0 0.0
  %89 = vmatpush1.msra.mxu0 0.0
  %90 = vmatprep.subr.mxu0 0.0
  %91 = vmatpush1.msra.mxu0 0.0
  %92 = vmatprep.subr.mxu0 0.0
  %93 = vmatpush1.msra.mxu0 0.0
  %94 = vmatprep.subr.mxu0 0.0
  %95 = vmatpush1.msra.mxu0 0.0
  %96 = vmatprep.subr.mxu0 0.0
  %97 = vmatpush1.msra.mxu0 0.0
  %98 = vmatprep.subr.mxu0 0.0
  %99 = vmatpush1.msra.mxu0 0.0
  %100 = vmatprep.subr.mxu0 0.0
  %101 = vmatpush1.msra.mxu0 0.0
  %102 = vmatprep.subr.mxu0 0.0
  %103 = vmatpush1.msra.mxu0 0.0
  %104 = vmatprep.subr.mxu0 0.0
  %105 = vmatpush1.msra.mxu0 0.0
  %106 = vmatprep.subr.mxu0 0.0
  %107 = vmatpush1.msra.mxu0 0.0
  %108 = vmatprep.subr.mxu0 0.0
  %109 = vmatpush1.msra.mxu0 0.0
  %110 = vmatprep.subr.mxu0 0.0
  %111 = vmatpush1.msra.mxu0 0.0
  %112 = vmatprep.subr.mxu0 0.0
  %113 = vmatpush1.msra.mxu0 0.0
  %114 = vmatprep.subr.mxu0 0.0
  %115 = vmatpush1.msra.mxu0 0.0
  %116 = vmatprep.subr.mxu0 0.0
  %117 = vmatpush1.msra.mxu0 0.0
  %118 = vmatprep.subr.mxu0 0.0
  %119 = vmatpush1.msra.mxu0 0.0
  %120 = vmatprep.subr.mxu0 0.0
  %121 = vmatpush1.msra.mxu0 0.0
  %122 = vmatprep.subr.mxu0 0.0
  %123 = vmatpush1.msra.mxu0 0.0
  %124 = vmatprep.subr.mxu0 0.0
  %125 = vmatpush1.msra.mxu0 0.0
  %126 = vmatprep.subr.mxu0 0.0
  %127 = vmatpush1.msra.mxu0 0.0
  %128 = vmatprep.subr.mxu0 0.0
  %129 = vmatpush1.msra.mxu0 0.0
  %130 = vmatprep.subr.mxu0 0.0
  %131 = vmatpush1.msra.mxu0 0.0
  %132 = vmatprep.mubr.f32.mxu0 0.0
  %133 = vmatmul.mubr.f32.gmra.mrb[0].mxu0 %v57
  %v134 = vpop.f32.mrb[0].mxu0
  %v135 = vadd.f32 %v38, %v134
  %v136 = vpop.f32.mrb[0].mxu0
  %137 = vmatprep.mubr.f32.mxu0 0.0
  %138 = vmatmul.mubr.f32.gmra.mrb[0].mxu0 %v60
  %v139 = vpop.f32.mrb[0].mxu0
  %v140 = vadd.f32 %v43, %v139
  %v141 = vpop.f32.mrb[0].mxu0
  %142 = vmatprep.mubr.f32.mxu0 0.0
  %143 = vmatmul.mubr.f32.gmra.mrb[0].mxu0 %v63
  %v144 = vpop.f32.mrb[0].mxu0
  %v145 = vadd.f32 %v48, %v144
  %v146 = vpop.f32.mrb[0].mxu0
  %147 = vmatprep.mubr.f32.mxu0 0.0
  %148 = vmatmul.mubr.f32.gmra.mrb[0].mxu0 %v66
  %v149 = vpop.f32.mrb[0].mxu0
  %v150 = vadd.f32 %v53, %v149
  %v151 = vpop.f32.mrb[0].mxu0
  %152 = vdwg.mxu0
  %v153 = vmax.f32 %v135, 0.0
  %v154 = vmax.f32 %v140, 0.0
  %v155 = vmax.f32 %v145, 0.0
  %v156 = vmax.f32 %v150, 0.0
  %v157 = vld [vmem:[%s3] sm:$0xff]
  %v158 = vld [vmem:[%s3 + $0x8] sm:$0xff]
  %v159 = vld [vmem:[%s4] sm:$0xff]
  %v160 = vld [vmem:[%s4 + $0x8] sm:$0xff]
  %162 = vset.pattern.permute.xlu0 0
  %163 = vperm.xlu0 %162, %v159
  %v164 = vpop.permute.xlu0 %163
  %167 = vset.pattern.permute.xlu0 0
  %168 = vperm.xlu0 %167, %v160
  %v169 = vpop.permute.xlu0 %168
  %vm171 = vcmask 261120
  %v173 = vsel %vm171, %v157, 0
  %v176 = vsel %vm171, %v158, 0
  %178 = vmatprep.subr.mxu0 0.0
  %179 = vmatpush1.msra.mxu0 %v153
  %180 = vmatprep.subr.mxu0 0.0
  %181 = vmatpush1.msra.mxu0 %v154
  %182 = vmatprep.subr.mxu0 0.0
  %183 = vmatpush1.msra.mxu0 %v155
  %184 = vmatprep.subr.mxu0 0.0
  %185 = vmatpush1.msra.mxu0 %v156
  %186 = vmatprep.subr.mxu0 0.0
  %187 = vmatpush1.msra.mxu0 0.0
  %188 = vmatprep.subr.mxu0 0.0
  %189 = vmatpush1.msra.mxu0 0.0
  %190 = vmatprep.subr.mxu0 0.0
  %191 = vmatpush1.msra.mxu0 0.0
  %192 = vmatprep.subr.mxu0 0.0
  %193 = vmatpush1.msra.mxu0 0.0
  %194 = vmatprep.subr.mxu0 0.0
  %195 = vmatpush1.msra.mxu0 0.0
  %196 = vmatprep.subr.mxu0 0.0
  %197 = vmatpush1.msra.mxu0 0.0
  %198 = vmatprep.subr.mxu0 0.0
  %199 = vmatpush1.msra.mxu0 0.0
  %200 = vmatprep.subr.mxu0 0.0
  %201 = vmatpush1.msra.mxu0 0.0
  %202 = vmatprep.subr.mxu0 0.0
  %203 = vmatpush1.msra.mxu0 0.0
  %204 = vmatprep.subr.mxu0 0.0
  %205 = vmatpush1.msra.mxu0 0.0
  %206 = vmatprep.subr.mxu0 0.0
  %207 = vmatpush1.msra.mxu0 0.0
  %208 = vmatprep.subr.mxu0 0.0
  %209 = vmatpush1.msra.mxu0 0.0
  %210 = vmatprep.subr.mxu0 0.0
  %211 = vmatpush1.msra.mxu0 0.0
  %212 = vmatprep.subr.mxu0 0.0
  %213 = vmatpush1.msra.mxu0 0.0
  %214 = vmatprep.subr.mxu0 0.0
  %215 = vmatpush1.msra.mxu0 0.0
  %216 = vmatprep.subr.mxu0 0.0
  %217 = vmatpush1.msra.mxu0 0.0
  %218 = vmatprep.subr.mxu0 0.0
  %219 = vmatpush1.msra.mxu0 0.0
  %220 = vmatprep.subr.mxu0 0.0
  %221 = vmatpush1.msra.mxu0 0.0
  %222 = vmatprep.subr.mxu0 0.0
  %223 = vmatpush1.msra.mxu0 0.0
  %224 = vmatprep.subr.mxu0 0.0
  %225 = vmatpush1.msra.mxu0 0.0
  %226 = vmatprep.subr.mxu0 0.0
  %227 = vmatpush1.msra.mxu0 0.0
  %228 = vmatprep.subr.mxu0 0.0
  %229 = vmatpush1.msra.mxu0 0.0
  %230 = vmatprep.subr.mxu0 0.0
  %231 = vmatpush1.msra.mxu0 0.0
  %232 = vmatprep.subr.mxu0 0.0
  %233 = vmatpush1.msra.mxu0 0.0
  %234 = vmatprep.subr.mxu0 0.0
  %235 = vmatpush1.msra.mxu0 0.0
  %236 = vmatprep.subr.mxu0 0.0
  %237 = vmatpush1.msra.mxu0 0.0
  %238 = vmatprep.subr.mxu0 0.0
  %239 = vmatpush1.msra.mxu0 0.0
  %240 = vmatprep.subr.mxu0 0.0
  %241 = vmatpush1.msra.mxu0 0.0
  %242 = vmatprep.mubr.f32.mxu0 0.0
  %243 = vmatmul.mubr.f32.gmra.mrb[0].mxu0 %v173
  %v244 = vpop.f32.mrb[0].mxu0
  %v245 = vadd.f32 %v164, %v244
  %v246 = vpop.f32.mrb[0].mxu0
  %247 = vmatprep.mubr.f32.mxu0 0.0
  %248 = vmatmul.mubr.f32.gmra.mrb[0].mxu0 %v176
  %v249 = vpop.f32.mrb[0].mxu0
  %v250 = vadd.f32 %v169, %v249
  %v251 = vpop.f32.mrb[0].mxu0
  %252 = vdwg.mxu0
  %v253 = vmax.f32 %v245, 0.0
  %v254 = vmax.f32 %v250, 0.0
  %v255 = vld [vmem:[%s5] sm:$0xf]
  %v256 = vld [vmem:[%s6] sm:$0xf]
  %258 = vset.pattern.permute.xlu0 0
  %259 = vperm.xlu0 %258, %v256
  %v260 = vpop.permute.xlu0 %259
  %vm262 = vcmask 130048
  %v264 = vsel %vm262, %v255, 0
  %266 = vmatprep.subr.mxu0 0.0
  %267 = vmatpush1.msra.mxu0 %v253
  %268 = vmatprep.subr.mxu0 0.0
  %269 = vmatpush1.msra.mxu0 %v254
  %270 = vmatprep.subr.mxu0 0.0
  %271 = vmatpush1.msra.mxu0 0.0
  %272 = vmatprep.subr.mxu0 0.0
  %273 = vmatpush1.msra.mxu0 0.0
  %274 = vmatprep.subr.mxu0 0.0
  %275 = vmatpush1.msra.mxu0 0.0
  %276 = vmatprep.subr.mxu0 0.0
  %277 = vmatpush1.msra.mxu0 0.0
  %278 = vmatprep.subr.mxu0 0.0
  %279 = vmatpush1.msra.mxu0 0.0
  %280 = vmatprep.subr.mxu0 0.0
  %281 = vmatpush1.msra.mxu0 0.0
  %282 = vmatprep.subr.mxu0 0.0
  %283 = vmatpush1.msra.mxu0 0.0
  %284 = vmatprep.subr.mxu0 0.0
  %285 = vmatpush1.msra.mxu0 0.0
  %286 = vmatprep.subr.mxu0 0.0
  %287 = vmatpush1.msra.mxu0 0.0
  %288 = vmatprep.subr.mxu0 0.0
  %289 = vmatpush1.msra.mxu0 0.0
  %290 = vmatprep.subr.mxu0 0.0
  %291 = vmatpush1.msra.mxu0 0.0
  %292 = vmatprep.subr.mxu0 0.0
  %293 = vmatpush1.msra.mxu0 0.0
  %294 = vmatprep.subr.mxu0 0.0
  %295 = vmatpush1.msra.mxu0 0.0
  %296 = vmatprep.subr.mxu0 0.0
  %297 = vmatpush1.msra.mxu0 0.0
  %298 = vmatprep.subr.mxu0 0.0
  %299 = vmatpush1.msra.mxu0 0.0
  %300 = vmatprep.subr.mxu0 0.0
  %301 = vmatpush1.msra.mxu0 0.0
  %302 = vmatprep.subr.mxu0 0.0
  %303 = vmatpush1.msra.mxu0 0.0
  %304 = vmatprep.subr.mxu0 0.0
  %305 = vmatpush1.msra.mxu0 0.0
  %306 = vmatprep.subr.mxu0 0.0
  %307 = vmatpush1.msra.mxu0 0.0
  %308 = vmatprep.subr.mxu0 0.0
  %309 = vmatpush1.msra.mxu0 0.0
  %310 = vmatprep.subr.mxu0 0.0
  %311 = vmatpush1.msra.mxu0 0.0
  %312 = vmatprep.subr.mxu0 0.0
  %313 = vmatpush1.msra.mxu0 0.0
  %314 = vmatprep.subr.mxu0 0.0
  %315 = vmatpush1.msra.mxu0 0.0
  %316 = vmatprep.subr.mxu0 0.0
  %317 = vmatpush1.msra.mxu0 0.0
  %318 = vmatprep.subr.mxu0 0.0
  %319 = vmatpush1.msra.mxu0 0.0
  %320 = vmatprep.subr.mxu0 0.0
  %321 = vmatpush1.msra.mxu0 0.0
  %322 = vmatprep.subr.mxu0 0.0
  %323 = vmatpush1.msra.mxu0 0.0
  %324 = vmatprep.subr.mxu0 0.0
  %325 = vmatpush1.msra.mxu0 0.0
  %326 = vmatprep.subr.mxu0 0.0
  %327 = vmatpush1.msra.mxu0 0.0
  %328 = vmatprep.subr.mxu0 0.0
  %329 = vmatpush1.msra.mxu0 0.0
  %330 = vmatprep.mubr.f32.mxu0 0.0
  %331 = vmatmul.mubr.f32.gmra.mrb[0].mxu0 %v264
  %v332 = vpop.f32.mrb[0].mxu0
  %v333 = vadd.f32 %v260, %v332
  %v334 = vpop.f32.mrb[0].mxu0
  %335 = vdwg.mxu0
  %vm336 = vcmask 11264
  %337 = vst.msk [vmem:[%s7] sm:$0xf] %vm336, %v333
  // Predicated region
  $region30: #{dqn_forward_feature_major.1} parent=0 // pred_check
    _
  $region31: #{dqn_forward_feature_major.1} parent=0 // pred_check_branch
    %339 = sbr.rel (0) target = $region33
  $region32: #{dqn_forward_feature_major.1} parent=0 // pred_region
    _
  $region33: #{dqn_forward_feature_major.1} parent=0 // pred_fallthru
    _
  // Predicated region
  $region34: #{dqn_forward_feature_major.1} parent=0 // pred_check
    _
  $region35: #{dqn_forward_feature_major.1} parent=0 // pred_check_branch
    %341 = sbr.rel (0) target = $region37
  $region36: #{dqn_forward_feature_major.1} parent=0 // pred_region
    _
  $region37: #{dqn_forward_feature_major.1} parent=0 // pred_fallthru
    _

</llo_original>
